<compile_context>
chip_gen: v6e
topology: v6e:2x2x1
jax: 0.10.0
libtpu: 0.0.40
codegen_flags: <defaults>
</compile_context>

<pallas_src>
import functools

import jax
import jax.numpy as jnp
from jax.experimental import pallas as pl
from jax.experimental.pallas import tpu as pltpu


def _round_up(x, m):
    return (x + m - 1) // m * m


def cvae_kernel(
    x_ref, y_ref, eps_ref,
    w1x_ref, w1y_ref, b1_ref,
    wml_ref, bml_ref,
    w2z_ref, w2y_ref, b2_ref,
    w3_ref, b3_ref,
    recon_ref, ml_ref,
    *, latent_dim,
):
    x = x_ref[...]          # bf16 matmul operand
    y = y_ref[...]          # bf16 matmul operand
    eps = eps_ref[...]      # f32
    mm_dtype = x.dtype

    # ----- encode: h = relu(cat(x, y) @ W1 + b1) -----
    h = (
        b1_ref[...]
        + jnp.dot(x, w1x_ref[...], preferred_element_type=jnp.float32)
        + jnp.dot(y, w1y_ref[...], preferred_element_type=jnp.float32)
    )
    h = jnp.maximum(h, 0.0).astype(mm_dtype)

    # ----- fused mu|logvar head: one wide matmul, packed output -----
    ml = bml_ref[...] + jnp.dot(h, wml_ref[...], preferred_element_type=jnp.float32)
    mu = ml[:, :latent_dim]
    logvar = ml[:, latent_dim:]

    # ----- reparameterize (f32 elementwise): z = mu + eps * exp(0.5*logvar) -----
    std = jnp.exp(0.5 * logvar)
    z = (mu + eps * std).astype(mm_dtype)

    # ----- decode: recon = relu(cat(z, y) @ W2 + b2) @ W3 + b3 -----
    h2 = (
        b2_ref[...]
        + jnp.dot(z, w2z_ref[...], preferred_element_type=jnp.float32)
        + jnp.dot(y, w2y_ref[...], preferred_element_type=jnp.float32)
    )
    h2 = jnp.maximum(h2, 0.0).astype(mm_dtype)
    recon = b3_ref[...] + jnp.dot(h2, w3_ref[...], preferred_element_type=jnp.float32)

    recon_ref[...] = recon.astype(recon_ref.dtype)
    ml_ref[...] = ml.astype(ml_ref.dtype)


def conditional_vae_forward(x, y, eps, params, *, block_b=512,
                            matmul_dtype=jnp.bfloat16):
    """Full cVAE forward in one pallas_call.

    x:   [B, input_dim]  f32
    y:   [B, label_dim]  f32 (one-hot condition)
    eps: [B, latent_dim] f32 (stands in for torch.randn_like, drawn outside)
    Returns (recon, mu, logvar) in f32.
    """
    B, input_dim = x.shape
    label_dim = y.shape[1]
    latent_dim = eps.shape[1]
    hidden_dim = params["b1"].shape[1]

    # Batch tile: multiple of 8 (f32 sublane); pad B up to a tile multiple.
    b_pad = _round_up(B, 8)
    tb = _round_up(min(block_b, b_pad), 8)
    b_pad = _round_up(b_pad, tb)
    if b_pad != B:
        pad = b_pad - B
        x = jnp.pad(x, ((0, pad), (0, 0)))
        y = jnp.pad(y, ((0, pad), (0, 0)))
        eps = jnp.pad(eps, ((0, pad), (0, 0)))
    num_tiles = b_pad // tb

    # MXU operands in bf16 (halves HBM bytes); biases/eps stay f32.
    xq = x.astype(matmul_dtype)
    yq = y.astype(matmul_dtype)
    wq = {k: params[k].astype(matmul_dtype)
          for k in ("w1x", "w1y", "wml", "w2z", "w2y", "w3")}

    inputs = (
        xq, yq, eps,
        wq["w1x"], wq["w1y"], params["b1"],
        wq["wml"], params["bml"],
        wq["w2z"], wq["w2y"], params["b2"],
        wq["w3"], params["b3"],
    )

    def row_spec(feat):
        return pl.BlockSpec((tb, feat), lambda i: (i, 0))

    def const_spec(shape):
        return pl.BlockSpec(shape, lambda i: (0, 0))

    in_specs = [
        row_spec(input_dim), row_spec(label_dim), row_spec(latent_dim),
        const_spec(wq["w1x"].shape), const_spec(wq["w1y"].shape),
        const_spec(params["b1"].shape),
        const_spec(wq["wml"].shape), const_spec(params["bml"].shape),
        const_spec(wq["w2z"].shape), const_spec(wq["w2y"].shape),
        const_spec(params["b2"].shape),
        const_spec(wq["w3"].shape), const_spec(params["b3"].shape),
    ]

    out_shapes = (
        jax.ShapeDtypeStruct((b_pad, input_dim), jnp.float32),       # recon
        jax.ShapeDtypeStruct((b_pad, 2 * latent_dim), jnp.float32),  # mu|logvar packed
    )
    out_specs = (row_spec(input_dim), row_spec(2 * latent_dim))

    # Advisory cost estimate (6 logical matmuls, one exp per latent element).
    flops = 2 * b_pad * (
        (input_dim + label_dim) * hidden_dim
        + hidden_dim * 2 * latent_dim
        + (latent_dim + label_dim) * hidden_dim
        + hidden_dim * input_dim
    )
    bytes_accessed = (
        sum(int(a.size) * a.dtype.itemsize for a in inputs)
        + sum(int(s.size) * s.dtype.itemsize for s in out_shapes)
    )
    cost = pl.CostEstimate(flops=flops,
                           transcendentals=b_pad * latent_dim,
                           bytes_accessed=bytes_accessed)

    recon, ml = pl.pallas_call(
        functools.partial(cvae_kernel, latent_dim=latent_dim),
        grid=(num_tiles,),
        in_specs=in_specs,
        out_specs=out_specs,
        out_shape=out_shapes,
        compiler_params=pltpu.CompilerParams(
            dimension_semantics=("parallel",),
        ),
        cost_estimate=cost,
    )(*inputs)

    recon = recon[:B]
    mu = ml[:B, :latent_dim]
    logvar = ml[:B, latent_dim:]
    return recon, mu, logvar


def init_params(key, input_dim, label_dim, hidden_dim, latent_dim):
    """Deterministic init. Weights stored [in, out] (pre-transposed vs torch);
    biases [1, out]; mu/logvar heads pre-packed into wml/bml for the fused head."""
    ks = jax.random.split(key, 10)

    def linear(kw, kb, fan_in, fan_out):
        bound = 1.0 / jnp.sqrt(fan_in)
        w = jax.random.uniform(kw, (fan_in, fan_out), jnp.float32, -bound, bound)
        b = jax.random.uniform(kb, (1, fan_out), jnp.float32, -bound, bound)
        return w, b

    w1, b1 = linear(ks[0], ks[1], input_dim + label_dim, hidden_dim)
    wmu, bmu = linear(ks[2], ks[3], hidden_dim, latent_dim)
    wlv, blv = linear(ks[4], ks[5], hidden_dim, latent_dim)
    w2, b2 = linear(ks[6], ks[7], latent_dim + label_dim, hidden_dim)
    w3, b3 = linear(ks[8], ks[9], hidden_dim, input_dim)

    return {
        "w1x": w1[:input_dim], "w1y": w1[input_dim:], "b1": b1,
        "wml": jnp.concatenate([wmu, wlv], axis=1),
        "bml": jnp.concatenate([bmu, blv], axis=1),
        "w2z": w2[:latent_dim], "w2y": w2[latent_dim:], "b2": b2,
        "w3": w3, "b3": b3,
    }


def reference_forward(x, y, eps, params, matmul_dtype=jnp.bfloat16):
    """Pure-JAX reference mirroring the kernel's precision choices
    (bf16 matmul operands, f32 accumulation, f32 elementwise)."""
    def mm(a, w):
        return jnp.dot(a.astype(matmul_dtype), w.astype(matmul_dtype),
                       preferred_element_type=jnp.float32)

    latent_dim = eps.shape[1]
    h = jnp.maximum(mm(x, params["w1x"]) + mm(y, params["w1y"]) + params["b1"], 0.0)
    ml = mm(h, params["wml"]) + params["bml"]
    mu, logvar = ml[:, :latent_dim], ml[:, latent_dim:]
    z = mu + eps * jnp.exp(0.5 * logvar)
    h2 = jnp.maximum(mm(z, params["w2z"]) + mm(y, params["w2y"]) + params["b2"], 0.0)
    recon = mm(h2, params["w3"]) + params["b3"]
    return recon, mu, logvar


if __name__ == "__main__":
    # Small shapes consistent with the module's fully-connected forward.
    # B deliberately not a tile multiple to exercise the padding path,
    # block_b=32 -> grid=(2,) to exercise the pipelined batch grid.
    B, input_dim, label_dim, hidden_dim, latent_dim = 50, 64, 16, 32, 16

    key = jax.random.PRNGKey(0)
    kx, ky, keps, kp = jax.random.split(key, 4)

    x = jax.random.normal(kx, (B, input_dim), jnp.float32)
    labels = jax.random.randint(ky, (B,), 0, label_dim)
    y = jax.nn.one_hot(labels, label_dim, dtype=jnp.float32)
    # eps stands in for torch.randn_like(std): RNG drawn outside the kernel.
    eps = jax.random.normal(keps, (B, latent_dim), jnp.float32)

    params = init_params(kp, input_dim, label_dim, hidden_dim, latent_dim)

    recon, mu, logvar = conditional_vae_forward(x, y, eps, params, block_b=32)
    jax.block_until_ready((recon, mu, logvar))

    # Sanity check against a precision-matched pure-JAX reference.
    r_ref, mu_ref, lv_ref = reference_forward(x, y, eps, params)
    assert recon.shape == (B, input_dim)
    assert mu.shape == (B, latent_dim)
    assert logvar.shape == (B, latent_dim)
    assert jnp.allclose(recon, r_ref, atol=2e-3, rtol=2e-3)
    assert jnp.allclose(mu, mu_ref, atol=2e-3, rtol=2e-3)
    assert jnp.allclose(logvar, lv_ref, atol=2e-3, rtol=2e-3)

    print("KERNEL_OK")
</pallas_src>

<mosaic_0001>
module attributes {stable_mosaic.version = 11 : i64} {
  func.func @cvae_kernel(%arg0: i32, %arg1: memref<32x64xbf16, #tpu.memory_space<vmem>>, %arg2: memref<32x16xbf16, #tpu.memory_space<vmem>>, %arg3: memref<32x16xf32, #tpu.memory_space<vmem>>, %arg4: memref<64x32xbf16, #tpu.memory_space<vmem>>, %arg5: memref<16x32xbf16, #tpu.memory_space<vmem>>, %arg6: memref<1x32xf32, #tpu.memory_space<vmem>>, %arg7: memref<32x32xbf16, #tpu.memory_space<vmem>>, %arg8: memref<1x32xf32, #tpu.memory_space<vmem>>, %arg9: memref<16x32xbf16, #tpu.memory_space<vmem>>, %arg10: memref<16x32xbf16, #tpu.memory_space<vmem>>, %arg11: memref<1x32xf32, #tpu.memory_space<vmem>>, %arg12: memref<32x64xbf16, #tpu.memory_space<vmem>>, %arg13: memref<1x64xf32, #tpu.memory_space<vmem>>, %arg14: memref<32x64xf32, #tpu.memory_space<vmem>>, %arg15: memref<32x32xf32, #tpu.memory_space<vmem>>) attributes {dimension_semantics = [#tpu.dimension_semantics<parallel>], iteration_bounds = array<i64: 2>, scalar_prefetch = 0 : i64, scratch_operands = 0 : i64, tpu.core_type = #tpu.core_type<tc>, window_params = [{transform_indices = @transform_0, window_bounds = array<i64: 32, 64>}, {transform_indices = @transform_1, window_bounds = array<i64: 32, 16>}, {transform_indices = @transform_2, window_bounds = array<i64: 32, 16>}, {pipeline_mode = #tpu.pipeline_mode<synchronous>, transform_indices = @transform_3, window_bounds = array<i64: 64, 32>}, {pipeline_mode = #tpu.pipeline_mode<synchronous>, transform_indices = @transform_4, window_bounds = array<i64: 16, 32>}, {pipeline_mode = #tpu.pipeline_mode<synchronous>, transform_indices = @transform_5, window_bounds = array<i64: 1, 32>}, {pipeline_mode = #tpu.pipeline_mode<synchronous>, transform_indices = @transform_6, window_bounds = array<i64: 32, 32>}, {pipeline_mode = #tpu.pipeline_mode<synchronous>, transform_indices = @transform_7, window_bounds = array<i64: 1, 32>}, {pipeline_mode = #tpu.pipeline_mode<synchronous>, transform_indices = @transform_8, window_bounds = array<i64: 16, 32>}, {pipeline_mode = #tpu.pipeline_mode<synchronous>, transform_indices = @transform_9, window_bounds = array<i64: 16, 32>}, {pipeline_mode = #tpu.pipeline_mode<synchronous>, transform_indices = @transform_10, window_bounds = array<i64: 1, 32>}, {pipeline_mode = #tpu.pipeline_mode<synchronous>, transform_indices = @transform_11, window_bounds = array<i64: 32, 64>}, {pipeline_mode = #tpu.pipeline_mode<synchronous>, transform_indices = @transform_12, window_bounds = array<i64: 1, 64>}, {transform_indices = @transform_13, window_bounds = array<i64: 32, 64>}, {transform_indices = @transform_14, window_bounds = array<i64: 32, 32>}]} {
    %c0 = arith.constant 0 : index
    %c0_0 = arith.constant 0 : index
    %0 = vector.load %arg1[%c0, %c0_0] : memref<32x64xbf16, #tpu.memory_space<vmem>>, vector<32x64xbf16>
    %c0_1 = arith.constant 0 : index
    %c0_2 = arith.constant 0 : index
    %1 = vector.load %arg2[%c0_1, %c0_2] : memref<32x16xbf16, #tpu.memory_space<vmem>>, vector<32x16xbf16>
    %c0_3 = arith.constant 0 : index
    %c0_4 = arith.constant 0 : index
    %2 = vector.load %arg3[%c0_3, %c0_4] : memref<32x16xf32, #tpu.memory_space<vmem>>, vector<32x16xf32>
    %c0_5 = arith.constant 0 : index
    %c0_6 = arith.constant 0 : index
    %3 = vector.load %arg6[%c0_5, %c0_6] : memref<1x32xf32, #tpu.memory_space<vmem>>, vector<1x32xf32>
    %c0_7 = arith.constant 0 : index
    %c0_8 = arith.constant 0 : index
    %4 = vector.load %arg4[%c0_7, %c0_8] : memref<64x32xbf16, #tpu.memory_space<vmem>>, vector<64x32xbf16>
    %cst = arith.constant dense<0.000000e+00> : vector<32x32xf32>
    %5 = tpu.matmul %0, %4, %cst {dimension_numbers = #tpu.dot_dimension_numbers<[1], [0], [0], [1], [0, 0, 1, 1], [], []>} : vector<32x64xbf16>, vector<64x32xbf16>, vector<32x32xf32> -> vector<32x32xf32>
    %6 = vector.broadcast %3 : vector<1x32xf32> to vector<32x32xf32>
    %7 = arith.addf %6, %5 : vector<32x32xf32>
    %c0_9 = arith.constant 0 : index
    %c0_10 = arith.constant 0 : index
    %8 = vector.load %arg5[%c0_9, %c0_10] : memref<16x32xbf16, #tpu.memory_space<vmem>>, vector<16x32xbf16>
    %cst_11 = arith.constant dense<0.000000e+00> : vector<32x32xf32>
    %9 = tpu.matmul %1, %8, %cst_11 {dimension_numbers = #tpu.dot_dimension_numbers<[1], [0], [0], [1], [0, 0, 1, 1], [], []>} : vector<32x16xbf16>, vector<16x32xbf16>, vector<32x32xf32> -> vector<32x32xf32>
    %10 = arith.addf %7, %9 : vector<32x32xf32>
    %cst_12 = arith.constant 0.000000e+00 : f32
    %11 = vector.broadcast %cst_12 : f32 to vector<32x32xf32>
    %12 = arith.maximumf %10, %11 : vector<32x32xf32>
    %13 = arith.truncf %12 : vector<32x32xf32> to vector<32x32xbf16>
    %c0_13 = arith.constant 0 : index
    %c0_14 = arith.constant 0 : index
    %14 = vector.load %arg8[%c0_13, %c0_14] : memref<1x32xf32, #tpu.memory_space<vmem>>, vector<1x32xf32>
    %c0_15 = arith.constant 0 : index
    %c0_16 = arith.constant 0 : index
    %15 = vector.load %arg7[%c0_15, %c0_16] : memref<32x32xbf16, #tpu.memory_space<vmem>>, vector<32x32xbf16>
    %cst_17 = arith.constant dense<0.000000e+00> : vector<32x32xf32>
    %16 = tpu.matmul %13, %15, %cst_17 {dimension_numbers = #tpu.dot_dimension_numbers<[1], [0], [0], [1], [0, 0, 1, 1], [], []>} : vector<32x32xbf16>, vector<32x32xbf16>, vector<32x32xf32> -> vector<32x32xf32>
    %17 = vector.broadcast %14 : vector<1x32xf32> to vector<32x32xf32>
    %18 = arith.addf %17, %16 : vector<32x32xf32>
    %19 = vector.extract_strided_slice %18 {offsets = [0, 0], sizes = [32, 16], strides = [1, 1]} : vector<32x32xf32> to vector<32x16xf32>
    %20 = vector.extract_strided_slice %18 {offsets = [0, 16], sizes = [32, 16], strides = [1, 1]} : vector<32x32xf32> to vector<32x16xf32>
    %cst_18 = arith.constant 5.000000e-01 : f32
    %21 = vector.broadcast %cst_18 : f32 to vector<32x16xf32>
    %22 = arith.mulf %21, %20 : vector<32x16xf32>
    %23 = math.exp %22 : vector<32x16xf32>
    %24 = arith.mulf %2, %23 : vector<32x16xf32>
    %25 = arith.addf %19, %24 : vector<32x16xf32>
    %26 = arith.truncf %25 : vector<32x16xf32> to vector<32x16xbf16>
    %c0_19 = arith.constant 0 : index
    %c0_20 = arith.constant 0 : index
    %27 = vector.load %arg11[%c0_19, %c0_20] : memref<1x32xf32, #tpu.memory_space<vmem>>, vector<1x32xf32>
    %c0_21 = arith.constant 0 : index
    %c0_22 = arith.constant 0 : index
    %28 = vector.load %arg9[%c0_21, %c0_22] : memref<16x32xbf16, #tpu.memory_space<vmem>>, vector<16x32xbf16>
    %cst_23 = arith.constant dense<0.000000e+00> : vector<32x32xf32>
    %29 = tpu.matmul %26, %28, %cst_23 {dimension_numbers = #tpu.dot_dimension_numbers<[1], [0], [0], [1], [0, 0, 1, 1], [], []>} : vector<32x16xbf16>, vector<16x32xbf16>, vector<32x32xf32> -> vector<32x32xf32>
    %30 = vector.broadcast %27 : vector<1x32xf32> to vector<32x32xf32>
    %31 = arith.addf %30, %29 : vector<32x32xf32>
    %c0_24 = arith.constant 0 : index
    %c0_25 = arith.constant 0 : index
    %32 = vector.load %arg10[%c0_24, %c0_25] : memref<16x32xbf16, #tpu.memory_space<vmem>>, vector<16x32xbf16>
    %cst_26 = arith.constant dense<0.000000e+00> : vector<32x32xf32>
    %33 = tpu.matmul %1, %32, %cst_26 {dimension_numbers = #tpu.dot_dimension_numbers<[1], [0], [0], [1], [0, 0, 1, 1], [], []>} : vector<32x16xbf16>, vector<16x32xbf16>, vector<32x32xf32> -> vector<32x32xf32>
    %34 = arith.addf %31, %33 : vector<32x32xf32>
    %cst_27 = arith.constant 0.000000e+00 : f32
    %35 = vector.broadcast %cst_27 : f32 to vector<32x32xf32>
    %36 = arith.maximumf %34, %35 : vector<32x32xf32>
    %37 = arith.truncf %36 : vector<32x32xf32> to vector<32x32xbf16>
    %c0_28 = arith.constant 0 : index
    %c0_29 = arith.constant 0 : index
    %38 = vector.load %arg13[%c0_28, %c0_29] : memref<1x64xf32, #tpu.memory_space<vmem>>, vector<1x64xf32>
    %c0_30 = arith.constant 0 : index
    %c0_31 = arith.constant 0 : index
    %39 = vector.load %arg12[%c0_30, %c0_31] : memref<32x64xbf16, #tpu.memory_space<vmem>>, vector<32x64xbf16>
    %cst_32 = arith.constant dense<0.000000e+00> : vector<32x64xf32>
    %40 = tpu.matmul %37, %39, %cst_32 {dimension_numbers = #tpu.dot_dimension_numbers<[1], [0], [0], [1], [0, 0, 1, 1], [], []>} : vector<32x32xbf16>, vector<32x64xbf16>, vector<32x64xf32> -> vector<32x64xf32>
    %41 = vector.broadcast %38 : vector<1x64xf32> to vector<32x64xf32>
    %42 = arith.addf %41, %40 : vector<32x64xf32>
    %c0_33 = arith.constant 0 : index
    %c0_34 = arith.constant 0 : index
    %43 = vector.load %arg14[%c0_33, %c0_34] : memref<32x64xf32, #tpu.memory_space<vmem>>, vector<32x64xf32>
    tpu.vector_store %arg14[%c0_33, %c0_34], %42 {strides = array<i32>} : memref<32x64xf32, #tpu.memory_space<vmem>>, vector<32x64xf32>,
    %c0_35 = arith.constant 0 : index
    %c0_36 = arith.constant 0 : index
    %44 = vector.load %arg15[%c0_35, %c0_36] : memref<32x32xf32, #tpu.memory_space<vmem>>, vector<32x32xf32>
    tpu.vector_store %arg15[%c0_35, %c0_36], %18 {strides = array<i32>} : memref<32x32xf32, #tpu.memory_space<vmem>>, vector<32x32xf32>,
    return
  }
  func.func @transform_0(%arg0: i32) -> (i32, i32) {
    %c0_i32 = arith.constant 0 : i32
    %c0_i32_0 = arith.constant 0 : i32
    return %arg0, %c0_i32 : i32, i32
  }
  func.func @transform_1(%arg0: i32) -> (i32, i32) {
    %c0_i32 = arith.constant 0 : i32
    %c0_i32_0 = arith.constant 0 : i32
    return %arg0, %c0_i32 : i32, i32
  }
  func.func @transform_2(%arg0: i32) -> (i32, i32) {
    %c0_i32 = arith.constant 0 : i32
    %c0_i32_0 = arith.constant 0 : i32
    return %arg0, %c0_i32 : i32, i32
  }
  func.func @transform_3(%arg0: i32) -> (i32, i32) {
    %c0_i32 = arith.constant 0 : i32
    %c0_i32_0 = arith.constant 0 : i32
    %c0_i32_1 = arith.constant 0 : i32
    return %c0_i32, %c0_i32_0 : i32, i32
  }
  func.func @transform_4(%arg0: i32) -> (i32, i32) {
    %c0_i32 = arith.constant 0 : i32
    %c0_i32_0 = arith.constant 0 : i32
    %c0_i32_1 = arith.constant 0 : i32
    return %c0_i32, %c0_i32_0 : i32, i32
  }
  func.func @transform_5(%arg0: i32) -> (i32, i32) {
    %c0_i32 = arith.constant 0 : i32
    %c0_i32_0 = arith.constant 0 : i32
    %c0_i32_1 = arith.constant 0 : i32
    return %c0_i32, %c0_i32_0 : i32, i32
  }
  func.func @transform_6(%arg0: i32) -> (i32, i32) {
    %c0_i32 = arith.constant 0 : i32
    %c0_i32_0 = arith.constant 0 : i32
    %c0_i32_1 = arith.constant 0 : i32
    return %c0_i32, %c0_i32_0 : i32, i32
  }
  func.func @transform_7(%arg0: i32) -> (i32, i32) {
    %c0_i32 = arith.constant 0 : i32
    %c0_i32_0 = arith.constant 0 : i32
    %c0_i32_1 = arith.constant 0 : i32
    return %c0_i32, %c0_i32_0 : i32, i32
  }
  func.func @transform_8(%arg0: i32) -> (i32, i32) {
    %c0_i32 = arith.constant 0 : i32
    %c0_i32_0 = arith.constant 0 : i32
    %c0_i32_1 = arith.constant 0 : i32
    return %c0_i32, %c0_i32_0 : i32, i32
  }
  func.func @transform_9(%arg0: i32) -> (i32, i32) {
    %c0_i32 = arith.constant 0 : i32
    %c0_i32_0 = arith.constant 0 : i32
    %c0_i32_1 = arith.constant 0 : i32
    return %c0_i32, %c0_i32_0 : i32, i32
  }
  func.func @transform_10(%arg0: i32) -> (i32, i32) {
    %c0_i32 = arith.constant 0 : i32
    %c0_i32_0 = arith.constant 0 : i32
    %c0_i32_1 = arith.constant 0 : i32
    return %c0_i32, %c0_i32_0 : i32, i32
  }
  func.func @transform_11(%arg0: i32) -> (i32, i32) {
    %c0_i32 = arith.constant 0 : i32
    %c0_i32_0 = arith.constant 0 : i32
    %c0_i32_1 = arith.constant 0 : i32
    return %c0_i32, %c0_i32_0 : i32, i32
  }
  func.func @transform_12(%arg0: i32) -> (i32, i32) {
    %c0_i32 = arith.constant 0 : i32
    %c0_i32_0 = arith.constant 0 : i32
    %c0_i32_1 = arith.constant 0 : i32
    return %c0_i32, %c0_i32_0 : i32, i32
  }
  func.func @transform_13(%arg0: i32) -> (i32, i32) {
    %c0_i32 = arith.constant 0 : i32
    %c0_i32_0 = arith.constant 0 : i32
    return %arg0, %c0_i32 : i32, i32
  }
  func.func @transform_14(%arg0: i32) -> (i32, i32) {
    %c0_i32 = arith.constant 0 : i32
    %c0_i32_0 = arith.constant 0 : i32
    return %arg0, %c0_i32 : i32, i32
  }
}

</mosaic_0001>

<llo_original>
// kernel: tpu_custom_call.1
$region0: #{tpu_custom_call.1}
  #allocation0 [shape = 'u32[]', space=smem, size = 0x4, offset = 0x4, fixed_abs, tag = 'smem constant byte address 0x4 - core index']
  #allocation1 [shape = 'u32[144,128]{1,0:T(1,128)}', space=vmem, size = 0x12000, scoped, tag = 'internal scratch']
  %s0 = inlined_call_operand.vmem [shape: bf16[64,64], index: 0, kind: input, shape index: {}]
  %s1 = inlined_call_operand.vmem [shape: bf16[64,16], index: 1, kind: input, shape index: {}]
  %s2 = inlined_call_operand.vmem [shape: f32[64,16], index: 2, kind: input, shape index: {}]
  %s3 = inlined_call_operand.vmem [shape: bf16[64,32], index: 3, kind: input, shape index: {}]
  %s4 = inlined_call_operand.vmem [shape: bf16[16,32], index: 4, kind: input, shape index: {}]
  %s5 = inlined_call_operand.vmem [shape: f32[1,32], index: 5, kind: input, shape index: {}]
  %s6 = inlined_call_operand.vmem [shape: bf16[32,32], index: 6, kind: input, shape index: {}]
  %s7 = inlined_call_operand.vmem [shape: f32[1,32], index: 7, kind: input, shape index: {}]
  %s8 = inlined_call_operand.vmem [shape: bf16[16,32], index: 8, kind: input, shape index: {}]
  %s9 = inlined_call_operand.vmem [shape: bf16[16,32], index: 9, kind: input, shape index: {}]
  %s10 = inlined_call_operand.vmem [shape: f32[1,32], index: 10, kind: input, shape index: {}]
  %s11 = inlined_call_operand.vmem [shape: bf16[32,64], index: 11, kind: input, shape index: {}]
  %s12 = inlined_call_operand.vmem [shape: f32[1,64], index: 12, kind: input, shape index: {}]
  %s13 = inlined_call_operand.hbm [shape: f32[64,64], index: 13, kind: output, shape index: {0}]
  %s14 = inlined_call_operand.vmem [shape: f32[64,32], index: 14, kind: output, shape index: {1}]
  %15 = xla_tuple %s13, %s14
  %s16 = sld [smem:[#allocation0]]
  $region93: #{tpu_custom_call.1} parent=0
    _
  %s18 = ssub.s32 1, %s16
  %s19 = scalar_select 0, %s18, %s16
  $region1: #{tpu_custom_call.1} parent=0
    #allocation2 [shape = 'u8[32768]{0}', space=vmem, size = 0x8000, scoped, tag = 'output window, operand 0']
    #allocation3 [shape = 's32[2]{0}', space=sflag, size = 0x8, scoped, tag = 'scoped memory for tpu_custom_call.1']
    %20 = vsyncpa [#allocation3], 0
    %s21 = scalar_lea.sflag [#allocation3], 1
    %22 = vsyncpa %s21, 0
    loop: start=0, step=1, limit=4
    $region2: #{tpu_custom_call.1} parent=1 // loop_pre_header
      _
    $region3: #{tpu_custom_call.1} parent=1 // loop_header
      %s24 = sphi 0, %s28
      %p25 = scmp.ge.s32.totalorder %s24, 4
      %s34 = sphi 0, %s36
      %s37 = sphi 0, %s34
      %s38 = sphi 0, %s37
      %s54 = sphi 0, %s38
      %s60 = sphi 0, %s62
      %s63 = sphi 0, %s60
      %s64 = sphi 0, %s63
      %s80 = sphi 0, %s64
      %s86 = sphi 0, %s88
      %s89 = sphi 0, %s86
      %s90 = sphi 0, %s89
      %s106 = sphi 0, %s90
      %s110 = sphi 0, %s110
      %s112 = sphi 0, %s110
      %s113 = sphi 0, %s112
      %s127 = sphi 0, %s113
      %s131 = sphi 0, %s131
      %s133 = sphi 0, %s131
      %s134 = sphi 0, %s133
      %s148 = sphi 0, %s134
      %s152 = sphi 0, %s152
      %s154 = sphi 0, %s152
      %s155 = sphi 0, %s154
      %s169 = sphi 0, %s155
      %s173 = sphi 0, %s173
      %s175 = sphi 0, %s173
      %s176 = sphi 0, %s175
      %s190 = sphi 0, %s176
      %s194 = sphi 0, %s194
      %s196 = sphi 0, %s194
      %s197 = sphi 0, %s196
      %s211 = sphi 0, %s197
      %s215 = sphi 0, %s215
      %s217 = sphi 0, %s215
      %s218 = sphi 0, %s217
      %s232 = sphi 0, %s218
      %s236 = sphi 0, %s236
      %s238 = sphi 0, %s236
      %s239 = sphi 0, %s238
      %s253 = sphi 0, %s239
      %s257 = sphi 0, %s257
      %s259 = sphi 0, %s257
      %s260 = sphi 0, %s259
      %s274 = sphi 0, %s260
      %s278 = sphi 0, %s278
      %s280 = sphi 0, %s278
      %s281 = sphi 0, %s280
      %s295 = sphi 0, %s281
      %s299 = sphi 0, %s299
      %s301 = sphi 0, %s299
      %s302 = sphi 0, %s301
      %s316 = sphi 0, %s302
      %s322 = sphi 0, %s324
      %s325 = sphi 0, %s322
      %s326 = sphi 0, %s325
      %s342 = sphi 0, %s326
      %s348 = sphi 0, %s350
      %s351 = sphi 0, %s348
      %s352 = sphi 0, %s351
      %s368 = sphi 0, %s352
    $region4: #{tpu_custom_call.1} parent=1 // loop_header_branch
      %27 = sbr.rel (%p25) target = $region8
    $region5: #{tpu_custom_call.1} parent=1 // loop_body
      %s29 = ssub.s32 %s24, 1
      %s30 = ssub.s32 %s24, 2
      %s31 = sadd.s32 %s24, 1
      %s32 = ssub.s32 %s24, %s31
      %p33 = scmp.eq.s32.totalorder %s32, 0
      %s35 = sadd.s32 %s34, 1
      %s36 = scalar_select %p33, %s34, %s35
      %p39 = pneg %p33
      %p40 = scmp.eq.s32.totalorder %s24, 1
      %p41 = por %p39, %p40
      %p42 = scmp.ne.s32.totalorder %s34, %s37
      %p43 = scmp.eq.s32.totalorder %s24, 0
      %p44 = por %p42, %p43
      %p45 = scmp.ne.s32.totalorder %s34, %s37
      %p46 = scmp.eq.s32.totalorder %s29, 1
      %p47 = por %p45, %p46
      %p48 = scmp.ne.s32.totalorder %s37, %s38
      %p49 = scmp.eq.s32.totalorder %s29, 0
      %p50 = por %p48, %p49
      %p51 = scmp.ne.s32.totalorder %s37, %s38
      %p52 = scmp.eq.s32.totalorder %s30, 1
      %p53 = por %p51, %p52
      %p55 = scmp.ne.s32.totalorder %s38, %s54
      %p56 = scmp.eq.s32.totalorder %s30, 0
      %p57 = por %p55, %p56
      %s58 = ssub.s32 %s24, %s31
      %p59 = scmp.eq.s32.totalorder %s58, 0
      %s61 = sadd.s32 %s60, 1
      %s62 = scalar_select %p59, %s60, %s61
      %p65 = pneg %p59
      %p66 = scmp.eq.s32.totalorder %s24, 1
      %p67 = por %p65, %p66
      %p68 = scmp.ne.s32.totalorder %s60, %s63
      %p69 = scmp.eq.s32.totalorder %s24, 0
      %p70 = por %p68, %p69
      %p71 = scmp.ne.s32.totalorder %s60, %s63
      %p72 = scmp.eq.s32.totalorder %s29, 1
      %p73 = por %p71, %p72
      %p74 = scmp.ne.s32.totalorder %s63, %s64
      %p75 = scmp.eq.s32.totalorder %s29, 0
      %p76 = por %p74, %p75
      %p77 = scmp.ne.s32.totalorder %s63, %s64
      %p78 = scmp.eq.s32.totalorder %s30, 1
      %p79 = por %p77, %p78
      %p81 = scmp.ne.s32.totalorder %s64, %s80
      %p82 = scmp.eq.s32.totalorder %s30, 0
      %p83 = por %p81, %p82
      %s84 = ssub.s32 %s24, %s31
      %p85 = scmp.eq.s32.totalorder %s84, 0
      %s87 = sadd.s32 %s86, 1
      %s88 = scalar_select %p85, %s86, %s87
      %p91 = pneg %p85
      %p92 = scmp.eq.s32.totalorder %s24, 1
      %p93 = por %p91, %p92
      %p94 = scmp.ne.s32.totalorder %s86, %s89
      %p95 = scmp.eq.s32.totalorder %s24, 0
      %p96 = por %p94, %p95
      %p97 = scmp.ne.s32.totalorder %s86, %s89
      %p98 = scmp.eq.s32.totalorder %s29, 1
      %p99 = por %p97, %p98
      %p100 = scmp.ne.s32.totalorder %s89, %s90
      %p101 = scmp.eq.s32.totalorder %s29, 0
      %p102 = por %p100, %p101
      %p103 = scmp.ne.s32.totalorder %s89, %s90
      %p104 = scmp.eq.s32.totalorder %s30, 1
      %p105 = por %p103, %p104
      %p107 = scmp.ne.s32.totalorder %s90, %s106
      %p108 = scmp.eq.s32.totalorder %s30, 0
      %p109 = por %p107, %p108
      %s111 = sadd.s32 %s110, 1
      %p114 = scmp.eq.s32.totalorder %s24, 1
      %p115 = scmp.ne.s32.totalorder %s110, %s112
      %p116 = scmp.eq.s32.totalorder %s24, 0
      %p117 = por %p115, %p116
      %p118 = scmp.ne.s32.totalorder %s110, %s112
      %p119 = scmp.eq.s32.totalorder %s29, 1
      %p120 = por %p118, %p119
      %p121 = scmp.ne.s32.totalorder %s112, %s113
      %p122 = scmp.eq.s32.totalorder %s29, 0
      %p123 = por %p121, %p122
      %p124 = scmp.ne.s32.totalorder %s112, %s113
      %p125 = scmp.eq.s32.totalorder %s30, 1
      %p126 = por %p124, %p125
      %p128 = scmp.ne.s32.totalorder %s113, %s127
      %p129 = scmp.eq.s32.totalorder %s30, 0
      %p130 = por %p128, %p129
      %s132 = sadd.s32 %s131, 1
      %p135 = scmp.eq.s32.totalorder %s24, 1
      %p136 = scmp.ne.s32.totalorder %s131, %s133
      %p137 = scmp.eq.s32.totalorder %s24, 0
      %p138 = por %p136, %p137
      %p139 = scmp.ne.s32.totalorder %s131, %s133
      %p140 = scmp.eq.s32.totalorder %s29, 1
      %p141 = por %p139, %p140
      %p142 = scmp.ne.s32.totalorder %s133, %s134
      %p143 = scmp.eq.s32.totalorder %s29, 0
      %p144 = por %p142, %p143
      %p145 = scmp.ne.s32.totalorder %s133, %s134
      %p146 = scmp.eq.s32.totalorder %s30, 1
      %p147 = por %p145, %p146
      %p149 = scmp.ne.s32.totalorder %s134, %s148
      %p150 = scmp.eq.s32.totalorder %s30, 0
      %p151 = por %p149, %p150
      %s153 = sadd.s32 %s152, 1
      %p156 = scmp.eq.s32.totalorder %s24, 1
      %p157 = scmp.ne.s32.totalorder %s152, %s154
      %p158 = scmp.eq.s32.totalorder %s24, 0
      %p159 = por %p157, %p158
      %p160 = scmp.ne.s32.totalorder %s152, %s154
      %p161 = scmp.eq.s32.totalorder %s29, 1
      %p162 = por %p160, %p161
      %p163 = scmp.ne.s32.totalorder %s154, %s155
      %p164 = scmp.eq.s32.totalorder %s29, 0
      %p165 = por %p163, %p164
      %p166 = scmp.ne.s32.totalorder %s154, %s155
      %p167 = scmp.eq.s32.totalorder %s30, 1
      %p168 = por %p166, %p167
      %p170 = scmp.ne.s32.totalorder %s155, %s169
      %p171 = scmp.eq.s32.totalorder %s30, 0
      %p172 = por %p170, %p171
      %s174 = sadd.s32 %s173, 1
      %p177 = scmp.eq.s32.totalorder %s24, 1
      %p178 = scmp.ne.s32.totalorder %s173, %s175
      %p179 = scmp.eq.s32.totalorder %s24, 0
      %p180 = por %p178, %p179
      %p181 = scmp.ne.s32.totalorder %s173, %s175
      %p182 = scmp.eq.s32.totalorder %s29, 1
      %p183 = por %p181, %p182
      %p184 = scmp.ne.s32.totalorder %s175, %s176
      %p185 = scmp.eq.s32.totalorder %s29, 0
      %p186 = por %p184, %p185
      %p187 = scmp.ne.s32.totalorder %s175, %s176
      %p188 = scmp.eq.s32.totalorder %s30, 1
      %p189 = por %p187, %p188
      %p191 = scmp.ne.s32.totalorder %s176, %s190
      %p192 = scmp.eq.s32.totalorder %s30, 0
      %p193 = por %p191, %p192
      %s195 = sadd.s32 %s194, 1
      %p198 = scmp.eq.s32.totalorder %s24, 1
      %p199 = scmp.ne.s32.totalorder %s194, %s196
      %p200 = scmp.eq.s32.totalorder %s24, 0
      %p201 = por %p199, %p200
      %p202 = scmp.ne.s32.totalorder %s194, %s196
      %p203 = scmp.eq.s32.totalorder %s29, 1
      %p204 = por %p202, %p203
      %p205 = scmp.ne.s32.totalorder %s196, %s197
      %p206 = scmp.eq.s32.totalorder %s29, 0
      %p207 = por %p205, %p206
      %p208 = scmp.ne.s32.totalorder %s196, %s197
      %p209 = scmp.eq.s32.totalorder %s30, 1
      %p210 = por %p208, %p209
      %p212 = scmp.ne.s32.totalorder %s197, %s211
      %p213 = scmp.eq.s32.totalorder %s30, 0
      %p214 = por %p212, %p213
      %s216 = sadd.s32 %s215, 1
      %p219 = scmp.eq.s32.totalorder %s24, 1
      %p220 = scmp.ne.s32.totalorder %s215, %s217
      %p221 = scmp.eq.s32.totalorder %s24, 0
      %p222 = por %p220, %p221
      %p223 = scmp.ne.s32.totalorder %s215, %s217
      %p224 = scmp.eq.s32.totalorder %s29, 1
      %p225 = por %p223, %p224
      %p226 = scmp.ne.s32.totalorder %s217, %s218
      %p227 = scmp.eq.s32.totalorder %s29, 0
      %p228 = por %p226, %p227
      %p229 = scmp.ne.s32.totalorder %s217, %s218
      %p230 = scmp.eq.s32.totalorder %s30, 1
      %p231 = por %p229, %p230
      %p233 = scmp.ne.s32.totalorder %s218, %s232
      %p234 = scmp.eq.s32.totalorder %s30, 0
      %p235 = por %p233, %p234
      %s237 = sadd.s32 %s236, 1
      %p240 = scmp.eq.s32.totalorder %s24, 1
      %p241 = scmp.ne.s32.totalorder %s236, %s238
      %p242 = scmp.eq.s32.totalorder %s24, 0
      %p243 = por %p241, %p242
      %p244 = scmp.ne.s32.totalorder %s236, %s238
      %p245 = scmp.eq.s32.totalorder %s29, 1
      %p246 = por %p244, %p245
      %p247 = scmp.ne.s32.totalorder %s238, %s239
      %p248 = scmp.eq.s32.totalorder %s29, 0
      %p249 = por %p247, %p248
      %p250 = scmp.ne.s32.totalorder %s238, %s239
      %p251 = scmp.eq.s32.totalorder %s30, 1
      %p252 = por %p250, %p251
      %p254 = scmp.ne.s32.totalorder %s239, %s253
      %p255 = scmp.eq.s32.totalorder %s30, 0
      %p256 = por %p254, %p255
      %s258 = sadd.s32 %s257, 1
      %p261 = scmp.eq.s32.totalorder %s24, 1
      %p262 = scmp.ne.s32.totalorder %s257, %s259
      %p263 = scmp.eq.s32.totalorder %s24, 0
      %p264 = por %p262, %p263
      %p265 = scmp.ne.s32.totalorder %s257, %s259
      %p266 = scmp.eq.s32.totalorder %s29, 1
      %p267 = por %p265, %p266
      %p268 = scmp.ne.s32.totalorder %s259, %s260
      %p269 = scmp.eq.s32.totalorder %s29, 0
      %p270 = por %p268, %p269
      %p271 = scmp.ne.s32.totalorder %s259, %s260
      %p272 = scmp.eq.s32.totalorder %s30, 1
      %p273 = por %p271, %p272
      %p275 = scmp.ne.s32.totalorder %s260, %s274
      %p276 = scmp.eq.s32.totalorder %s30, 0
      %p277 = por %p275, %p276
      %s279 = sadd.s32 %s278, 1
      %p282 = scmp.eq.s32.totalorder %s24, 1
      %p283 = scmp.ne.s32.totalorder %s278, %s280
      %p284 = scmp.eq.s32.totalorder %s24, 0
      %p285 = por %p283, %p284
      %p286 = scmp.ne.s32.totalorder %s278, %s280
      %p287 = scmp.eq.s32.totalorder %s29, 1
      %p288 = por %p286, %p287
      %p289 = scmp.ne.s32.totalorder %s280, %s281
      %p290 = scmp.eq.s32.totalorder %s29, 0
      %p291 = por %p289, %p290
      %p292 = scmp.ne.s32.totalorder %s280, %s281
      %p293 = scmp.eq.s32.totalorder %s30, 1
      %p294 = por %p292, %p293
      %p296 = scmp.ne.s32.totalorder %s281, %s295
      %p297 = scmp.eq.s32.totalorder %s30, 0
      %p298 = por %p296, %p297
      %s300 = sadd.s32 %s299, 1
      %p303 = scmp.eq.s32.totalorder %s24, 1
      %p304 = scmp.ne.s32.totalorder %s299, %s301
      %p305 = scmp.eq.s32.totalorder %s24, 0
      %p306 = por %p304, %p305
      %p307 = scmp.ne.s32.totalorder %s299, %s301
      %p308 = scmp.eq.s32.totalorder %s29, 1
      %p309 = por %p307, %p308
      %p310 = scmp.ne.s32.totalorder %s301, %s302
      %p311 = scmp.eq.s32.totalorder %s29, 0
      %p312 = por %p310, %p311
      %p313 = scmp.ne.s32.totalorder %s301, %s302
      %p314 = scmp.eq.s32.totalorder %s30, 1
      %p315 = por %p313, %p314
      %p317 = scmp.ne.s32.totalorder %s302, %s316
      %p318 = scmp.eq.s32.totalorder %s30, 0
      %p319 = por %p317, %p318
      %s320 = ssub.s32 %s24, %s31
      %p321 = scmp.eq.s32.totalorder %s320, 0
      %s323 = sadd.s32 %s322, 1
      %s324 = scalar_select %p321, %s322, %s323
      %p327 = pneg %p321
      %p328 = scmp.eq.s32.totalorder %s24, 1
      %p329 = por %p327, %p328
      %p330 = scmp.ne.s32.totalorder %s322, %s325
      %p331 = scmp.eq.s32.totalorder %s24, 0
      %p332 = por %p330, %p331
      %p333 = scmp.ne.s32.totalorder %s322, %s325
      %p334 = scmp.eq.s32.totalorder %s29, 1
      %p335 = por %p333, %p334
      %p336 = scmp.ne.s32.totalorder %s325, %s326
      %p337 = scmp.eq.s32.totalorder %s29, 0
      %p338 = por %p336, %p337
      %p339 = scmp.ne.s32.totalorder %s325, %s326
      %p340 = scmp.eq.s32.totalorder %s30, 1
      %p341 = por %p339, %p340
      %p343 = scmp.ne.s32.totalorder %s326, %s342
      %p344 = scmp.eq.s32.totalorder %s30, 0
      %p345 = por %p343, %p344
      %s346 = ssub.s32 %s24, %s31
      %p347 = scmp.eq.s32.totalorder %s346, 0
      %s349 = sadd.s32 %s348, 1
      %s350 = scalar_select %p347, %s348, %s349
      %p353 = pneg %p347
      %p354 = scmp.eq.s32.totalorder %s24, 1
      %p355 = por %p353, %p354
      %p356 = scmp.ne.s32.totalorder %s348, %s351
      %p357 = scmp.eq.s32.totalorder %s24, 0
      %p358 = por %p356, %p357
      %p359 = scmp.ne.s32.totalorder %s348, %s351
      %p360 = scmp.eq.s32.totalorder %s29, 1
      %p361 = por %p359, %p360
      %p362 = scmp.ne.s32.totalorder %s351, %s352
      %p363 = scmp.eq.s32.totalorder %s29, 0
      %p364 = por %p362, %p363
      %p365 = scmp.ne.s32.totalorder %s351, %s352
      %p366 = scmp.eq.s32.totalorder %s30, 1
      %p367 = por %p365, %p366
      %p369 = scmp.ne.s32.totalorder %s352, %s368
      %p370 = scmp.eq.s32.totalorder %s30, 0
      %p371 = por %p369, %p370
      %p372 = scmp.le.s32.totalorder 1, %s24
      %p373 = scmp.lt.s32.totalorder %s24, 3
      %p374 = pnand %p372, %p373
      %p375 = pneg %p374
      // Predicated region
      $region9: #{tpu_custom_call.1} parent=5 // pred_check
        _
      $region10: #{tpu_custom_call.1} parent=5 // pred_check_branch
        %377 = sbr.rel (%p374) target = $region12
      $region11: #{tpu_custom_call.1} parent=5 // pred_region
        %s378 = ssub.s32 %s24, 1
        // Predicated region
        $region13: #{tpu_custom_call.1} parent=11 // pred_check
          %p379 = pneg %p123
        $region14: #{tpu_custom_call.1} parent=11 // pred_check_branch
          %381 = sbr.rel (%p379) target = $region16
        $region15: #{tpu_custom_call.1} parent=11 // pred_region
          _
        $region16: #{tpu_custom_call.1} parent=11 // pred_fallthru
          _
        // Predicated region
        $region17: #{tpu_custom_call.1} parent=11 // pred_check
          %p382 = pneg %p144
        $region18: #{tpu_custom_call.1} parent=11 // pred_check_branch
          %384 = sbr.rel (%p382) target = $region20
        $region19: #{tpu_custom_call.1} parent=11 // pred_region
          _
        $region20: #{tpu_custom_call.1} parent=11 // pred_fallthru
          _
        // Predicated region
        $region21: #{tpu_custom_call.1} parent=11 // pred_check
          %p385 = pneg %p165
        $region22: #{tpu_custom_call.1} parent=11 // pred_check_branch
          %387 = sbr.rel (%p385) target = $region24
        $region23: #{tpu_custom_call.1} parent=11 // pred_region
          _
        $region24: #{tpu_custom_call.1} parent=11 // pred_fallthru
          _
        // Predicated region
        $region25: #{tpu_custom_call.1} parent=11 // pred_check
          %p388 = pneg %p186
        $region26: #{tpu_custom_call.1} parent=11 // pred_check_branch
          %390 = sbr.rel (%p388) target = $region28
        $region27: #{tpu_custom_call.1} parent=11 // pred_region
          _
        $region28: #{tpu_custom_call.1} parent=11 // pred_fallthru
          _
        // Predicated region
        $region29: #{tpu_custom_call.1} parent=11 // pred_check
          %p391 = pneg %p207
        $region30: #{tpu_custom_call.1} parent=11 // pred_check_branch
          %393 = sbr.rel (%p391) target = $region32
        $region31: #{tpu_custom_call.1} parent=11 // pred_region
          _
        $region32: #{tpu_custom_call.1} parent=11 // pred_fallthru
          _
        // Predicated region
        $region33: #{tpu_custom_call.1} parent=11 // pred_check
          %p394 = pneg %p228
        $region34: #{tpu_custom_call.1} parent=11 // pred_check_branch
          %396 = sbr.rel (%p394) target = $region36
        $region35: #{tpu_custom_call.1} parent=11 // pred_region
          _
        $region36: #{tpu_custom_call.1} parent=11 // pred_fallthru
          _
        // Predicated region
        $region37: #{tpu_custom_call.1} parent=11 // pred_check
          %p397 = pneg %p249
        $region38: #{tpu_custom_call.1} parent=11 // pred_check_branch
          %399 = sbr.rel (%p397) target = $region40
        $region39: #{tpu_custom_call.1} parent=11 // pred_region
          _
        $region40: #{tpu_custom_call.1} parent=11 // pred_fallthru
          _
        // Predicated region
        $region41: #{tpu_custom_call.1} parent=11 // pred_check
          %p400 = pneg %p270
        $region42: #{tpu_custom_call.1} parent=11 // pred_check_branch
          %402 = sbr.rel (%p400) target = $region44
        $region43: #{tpu_custom_call.1} parent=11 // pred_region
          _
        $region44: #{tpu_custom_call.1} parent=11 // pred_fallthru
          _
        // Predicated region
        $region45: #{tpu_custom_call.1} parent=11 // pred_check
          %p403 = pneg %p291
        $region46: #{tpu_custom_call.1} parent=11 // pred_check_branch
          %405 = sbr.rel (%p403) target = $region48
        $region47: #{tpu_custom_call.1} parent=11 // pred_region
          _
        $region48: #{tpu_custom_call.1} parent=11 // pred_fallthru
          _
        // Predicated region
        $region49: #{tpu_custom_call.1} parent=11 // pred_check
          %p406 = pneg %p312
        $region50: #{tpu_custom_call.1} parent=11 // pred_check_branch
          %408 = sbr.rel (%p406) target = $region52
        $region51: #{tpu_custom_call.1} parent=11 // pred_region
          _
        $region52: #{tpu_custom_call.1} parent=11 // pred_fallthru
          _
      $region12: #{tpu_custom_call.1} parent=5 // pred_fallthru
        _
      %p409 = scmp.lt.s32.totalorder %s24, 2
      // Predicated region
      $region53: #{tpu_custom_call.1} parent=5 // pred_check
        %p410 = pneg %p409
      $region54: #{tpu_custom_call.1} parent=5 // pred_check_branch
        %412 = sbr.rel (%p410) target = $region56
      $region55: #{tpu_custom_call.1} parent=5 // pred_region
        // Predicated region
        $region57: #{tpu_custom_call.1} parent=55 // pred_check
          %p413 = pneg %p44
        $region58: #{tpu_custom_call.1} parent=55 // pred_check_branch
          %415 = sbr.rel (%p413) target = $region60
        $region59: #{tpu_custom_call.1} parent=55 // pred_region
          %s416 = smul.u32 4, %s24
          %p417 = scmp.lt.s32.totalorder %s416, 7
          %s418 = scalar_select %p417, %s416, 7
          %s419 = smul.addr %s418, 4
          %s420 = scalar_lea.vmem %s0, %s419
          %s421 = smul.u32 4, %s24
        $region60: #{tpu_custom_call.1} parent=55 // pred_fallthru
          _
        // Predicated region
        $region61: #{tpu_custom_call.1} parent=55 // pred_check
          %p422 = pneg %p70
        $region62: #{tpu_custom_call.1} parent=55 // pred_check_branch
          %424 = sbr.rel (%p422) target = $region64
        $region63: #{tpu_custom_call.1} parent=55 // pred_region
          %s425 = smul.u32 4, %s24
          %p426 = scmp.lt.s32.totalorder %s425, 7
          %s427 = scalar_select %p426, %s425, 7
          %s428 = smul.addr %s427, 4
          %s429 = scalar_lea.vmem %s1, %s428
          %s430 = smul.u32 4, %s24
        $region64: #{tpu_custom_call.1} parent=55 // pred_fallthru
          _
        // Predicated region
        $region65: #{tpu_custom_call.1} parent=55 // pred_check
          %p431 = pneg %p96
        $region66: #{tpu_custom_call.1} parent=55 // pred_check_branch
          %433 = sbr.rel (%p431) target = $region68
        $region67: #{tpu_custom_call.1} parent=55 // pred_region
          %s434 = smul.u32 4, %s24
          %p435 = scmp.lt.s32.totalorder %s434, 7
          %s436 = scalar_select %p435, %s434, 7
          %s437 = smul.addr %s436, 8
          %s438 = scalar_lea.vmem %s2, %s437
          %s439 = smul.u32 4, %s24
        $region68: #{tpu_custom_call.1} parent=55 // pred_fallthru
          _
      $region56: #{tpu_custom_call.1} parent=5 // pred_fallthru
        _
      %p440 = scmp.le.s32.totalorder 1, %s24
      %p441 = scmp.lt.s32.totalorder %s24, 3
      %p442 = pnand %p440, %p441
      %p443 = pneg %p442
      // Predicated region
      $region69: #{tpu_custom_call.1} parent=5 // pred_check
        _
      $region70: #{tpu_custom_call.1} parent=5 // pred_check_branch
        %445 = sbr.rel (%p442) target = $region72
      $region71: #{tpu_custom_call.1} parent=5 // pred_region
        %s446 = ssub.s32 %s24, 1
        %s447 = smul.u32 4, %s29
        %p448 = scmp.lt.s32.totalorder %s447, 7
        %s449 = scalar_select %p448, %s447, 7
        %s450 = smul.addr %s449, 4
        %s451 = scalar_lea.vmem %s0, %s450
        %p452 = pneg %p50
        %p453 = pneg %p47
        %s454 = smul.u32 4, %s29
        %p455 = scmp.lt.s32.totalorder %s454, 7
        %s456 = scalar_select %p455, %s454, 7
        %s457 = smul.addr %s456, 4
        %s458 = scalar_lea.vmem %s1, %s457
        %p459 = pneg %p76
        %p460 = pneg %p73
        %s461 = smul.u32 4, %s29
        %p462 = scmp.lt.s32.totalorder %s461, 7
        %s463 = scalar_select %p462, %s461, 7
        %s464 = smul.addr %s463, 8
        %s465 = scalar_lea.vmem %s2, %s464
        %p466 = pneg %p102
        %p467 = pneg %p99
        %p468 = pneg %p123
        %p469 = pneg %p120
        %p470 = pneg %p144
        %p471 = pneg %p141
        %p472 = pneg %p165
        %p473 = pneg %p162
        %p474 = pneg %p186
        %p475 = pneg %p183
        %p476 = pneg %p207
        %p477 = pneg %p204
        %p478 = pneg %p228
        %p479 = pneg %p225
        %p480 = pneg %p249
        %p481 = pneg %p246
        %p482 = pneg %p270
        %p483 = pneg %p267
        %p484 = pneg %p291
        %p485 = pneg %p288
        %p486 = pneg %p312
        %p487 = pneg %p309
        %p488 = pneg %p338
        %p489 = pneg %p335
        %s490 = sand.u32 %s325, 1
        %s491 = scalar_lea.sflag [#allocation3], %s490
        %s492 = sand.u32 %s325, 1
        %s493 = smul.addr %s492, 32
        %s494 = scalar_lea.vmem [#allocation2], %s493
        %p495 = pneg %p364
        %p496 = pneg %p361
        %s497 = smul.u32 4, %s29
        %p498 = scmp.lt.s32.totalorder %s497, 7
        %s499 = scalar_select %p498, %s497, 7
        %s500 = smul.addr %s499, 8
        %s501 = scalar_lea.vmem %s14, %s500
        %s502 = smul.u32 4, %s29
        %p503 = scmp.lt.s32.totalorder %s502, 7
        %s504 = scalar_select %p503, %s502, 7
        %s505 = smul.addr %s504, 4
        %s506 = scalar_lea.vmem %s0, %s505
        %s507 = smul.u32 4, %s29
        %s508 = smul.u32 4, %s29
        %p509 = scmp.lt.s32.totalorder %s508, 7
        %s510 = scalar_select %p509, %s508, 7
        %s511 = smul.addr %s510, 4
        %s512 = scalar_lea.vmem %s1, %s511
        %s513 = smul.u32 4, %s29
        %s514 = smul.u32 4, %s29
        %p515 = scmp.lt.s32.totalorder %s514, 7
        %s516 = scalar_select %p515, %s514, 7
        %s517 = smul.addr %s516, 8
        %s518 = scalar_lea.vmem %s2, %s517
        %s519 = smul.u32 4, %s29
        %s520 = smul.u32 4, %s29
        %s521 = smul.u32 4, %s29
        %p522 = scmp.lt.s32.totalorder %s521, 7
        %s523 = scalar_select %p522, %s521, 7
        %s524 = smul.addr %s523, 8
        %s525 = scalar_lea.vmem %s14, %s524
        %s526 = smul.u32 4, %s29
        %v528 = vld [vmem:[%s506] sm:$0xf]
        %v529 = vld [vmem:[%s506 + $0x4] sm:$0xf]
        %v530 = vld [vmem:[%s506 + $0x8] sm:$0xf]
        %v531 = vld [vmem:[%s506 + $0xc] sm:$0xf]
        %v532 = vld [vmem:[%s512] sm:$0xf]
        %v533 = vld [vmem:[%s512 + $0x4] sm:$0xf]
        %v534 = vld [vmem:[%s512 + $0x8] sm:$0xf]
        %v535 = vld [vmem:[%s512 + $0xc] sm:$0xf]
        %v536 = vld [vmem:[%s518] sm:$0xff]
        %v537 = vld [vmem:[%s518 + $0x8] sm:$0xff]
        %v538 = vld [vmem:[%s518 + $0x10] sm:$0xff]
        %v539 = vld [vmem:[%s518 + $0x18] sm:$0xff]
        %v540 = vld [vmem:[%s5] sm:$0x1]
        %v541 = vld [vmem:[%s3] sm:$0xf]
        %v542 = vld [vmem:[%s3 + $0x4] sm:$0xf]
        %v543 = vld [vmem:[%s3 + $0x8] sm:$0xf]
        %v544 = vld [vmem:[%s3 + $0xc] sm:$0xf]
        %v545 = vld [vmem:[%s3 + $0x10] sm:$0xf]
        %v546 = vld [vmem:[%s3 + $0x14] sm:$0xf]
        %v547 = vld [vmem:[%s3 + $0x18] sm:$0xf]
        %v548 = vld [vmem:[%s3 + $0x1c] sm:$0xf]
        %v553 = vunpack.c.l.b16 %v528
        %v554 = vunpack.c.l.b16 %v529
        %v555 = vunpack.c.l.b16 %v530
        %v556 = vunpack.c.l.b16 %v531
        %v557 = vpack.c.b16 %v554, %v553
        %v558 = vpack.c.b16 %v556, %v555
        %v567 = vunpack.c.l.b16 %v541
        %v568 = vunpack.c.l.b16 %v542
        %v569 = vunpack.c.l.b16 %v543
        %v570 = vunpack.c.l.b16 %v544
        %v571 = vunpack.c.l.b16 %v545
        %v572 = vunpack.c.l.b16 %v546
        %v573 = vunpack.c.l.b16 %v547
        %v574 = vunpack.c.l.b16 %v548
        %v575 = vpack.c.b16 %v568, %v567
        %v576 = vpack.c.b16 %v570, %v569
        %v577 = vpack.c.b16 %v572, %v571
        %v578 = vpack.c.b16 %v574, %v573
        %vm583 = vcmask 523264
        %v585 = vsel %vm583, %v557, 0
        %v588 = vsel %vm583, %v558, 0
        %590 = vmatprep.subr.bf16.mxu0 0
        %591 = vmatpush1.bf16.msra.mxu0 0
        %592 = vmatprep.subr.bf16.mxu0 0
        %593 = vmatpush1.bf16.msra.mxu0 0
        %594 = vmatprep.subr.bf16.mxu0 0
        %595 = vmatpush1.bf16.msra.mxu0 0
        %596 = vmatprep.subr.bf16.mxu0 0
        %597 = vmatpush1.bf16.msra.mxu0 0
        %598 = vmatprep.subr.bf16.mxu0 0
        %599 = vmatpush1.bf16.msra.mxu0 %v578
        %600 = vmatprep.subr.bf16.mxu0 0
        %601 = vmatpush1.bf16.msra.mxu0 %v577
        %602 = vmatprep.subr.bf16.mxu0 0
        %603 = vmatpush1.bf16.msra.mxu0 %v576
        %604 = vmatprep.subr.bf16.mxu0 0
        %605 = vmatpush1.bf16.msra.mxu0 %v575
        %606 = vmatprep.subr.bf16.mxu0 0
        %607 = vmatpush2.bf16.msra.mxu0 0
        %608 = vmatprep.subr.bf16.mxu0 0
        %609 = vmatpush2.bf16.msra.mxu0 0
        %610 = vmatprep.subr.bf16.mxu0 0
        %611 = vmatpush2.bf16.msra.mxu0 0
        %612 = vmatprep.subr.bf16.mxu0 0
        %613 = vmatpush2.bf16.msra.mxu0 0
        %614 = vmatprep.subr.bf16.mxu0 0
        %615 = vmatpush2.bf16.msra.mxu0 0
        %616 = vmatprep.subr.bf16.mxu0 0
        %617 = vmatpush2.bf16.msra.mxu0 0
        %618 = vmatprep.subr.bf16.mxu0 0
        %619 = vmatpush2.bf16.msra.mxu0 0
        %620 = vmatprep.subr.bf16.mxu0 0
        %621 = vmatpush2.bf16.msra.mxu0 0
        %622 = vmatprep.mubr.bf16.mxu0 0
        %623 = vmatmul.mubr.bf16.gmra.mxu0 %v585
        %v624 = vpop.f32.mrf.mxu0
        %v625 = vadd.f32 0.0, %v624
        %v626 = vpop.f32.mrf.mxu0
        %v627 = vpop.f32.mrf.mxu0
        %v628 = vadd.f32 0.0, %v627
        %v629 = vpop.f32.mrf.mxu0
        %630 = vmatprep.mubr.bf16.mxu0 0
        %631 = vmatmul.mubr.bf16.gmra.mxu0 %v588
        %v632 = vpop.f32.mrf.mxu0
        %v633 = vadd.f32 0.0, %v632
        %v634 = vpop.f32.mrf.mxu0
        %v635 = vpop.f32.mrf.mxu0
        %v636 = vadd.f32 0.0, %v635
        %v637 = vpop.f32.mrf.mxu0
        %638 = vdwg.mxu0
        %v640 = vlaneseq
        %v641 = vshrl.u32 %v640, 7
        %v642 = vsub.s32 0, %v641
        %v643 = vrot.slane %v540, %v642
        %v645 = vadd.f32 %v643, %v625
        %v646 = vadd.f32 %v643, %v628
        %v647 = vadd.f32 %v643, %v633
        %v648 = vadd.f32 %v643, %v636
        %v649 = vld [vmem:[%s4] sm:$0xf]
        %v650 = vld [vmem:[%s4 + $0x4] sm:$0xf]
        %v655 = vunpack.c.l.b16 %v532
        %v656 = vunpack.c.l.b16 %v533
        %v657 = vunpack.c.l.b16 %v534
        %v658 = vunpack.c.l.b16 %v535
        %v659 = vpack.c.b16 %v656, %v655
        %v660 = vpack.c.b16 %v658, %v657
        %v663 = vunpack.c.l.b16 %v649
        %v664 = vunpack.c.l.b16 %v650
        %v665 = vpack.c.b16 %v664, %v663
        %vm667 = vcmask 130048
        %v669 = vsel %vm667, %v659, 0
        %v672 = vsel %vm667, %v660, 0
        %674 = vmatprep.subr.bf16.mxu0 0
        %675 = vmatpush1.bf16.msra.mxu0 0
        %676 = vmatprep.subr.bf16.mxu0 0
        %677 = vmatpush1.bf16.msra.mxu0 0
        %678 = vmatprep.subr.bf16.mxu0 0
        %679 = vmatpush1.bf16.msra.mxu0 0
        %680 = vmatprep.subr.bf16.mxu0 0
        %681 = vmatpush1.bf16.msra.mxu0 0
        %682 = vmatprep.subr.bf16.mxu0 0
        %683 = vmatpush1.bf16.msra.mxu0 0
        %684 = vmatprep.subr.bf16.mxu0 0
        %685 = vmatpush1.bf16.msra.mxu0 0
        %686 = vmatprep.subr.bf16.mxu0 0
        %687 = vmatpush1.bf16.msra.mxu0 0
        %688 = vmatprep.subr.bf16.mxu0 0
        %689 = vmatpush1.bf16.msra.mxu0 %v665
        %690 = vmatprep.subr.bf16.mxu0 0
        %691 = vmatpush2.bf16.msra.mxu0 0
        %692 = vmatprep.subr.bf16.mxu0 0
        %693 = vmatpush2.bf16.msra.mxu0 0
        %694 = vmatprep.subr.bf16.mxu0 0
        %695 = vmatpush2.bf16.msra.mxu0 0
        %696 = vmatprep.subr.bf16.mxu0 0
        %697 = vmatpush2.bf16.msra.mxu0 0
        %698 = vmatprep.subr.bf16.mxu0 0
        %699 = vmatpush2.bf16.msra.mxu0 0
        %700 = vmatprep.subr.bf16.mxu0 0
        %701 = vmatpush2.bf16.msra.mxu0 0
        %702 = vmatprep.subr.bf16.mxu0 0
        %703 = vmatpush2.bf16.msra.mxu0 0
        %704 = vmatprep.subr.bf16.mxu0 0
        %705 = vmatpush2.bf16.msra.mxu0 0
        %706 = vmatprep.mubr.bf16.mxu0 0
        %707 = vmatmul.mubr.bf16.gmra.mxu0 %v669
        %v708 = vpop.f32.mrf.mxu0
        %v709 = vadd.f32 0.0, %v708
        %v710 = vpop.f32.mrf.mxu0
        %v711 = vpop.f32.mrf.mxu0
        %v712 = vadd.f32 0.0, %v711
        %v713 = vpop.f32.mrf.mxu0
        %714 = vmatprep.mubr.bf16.mxu0 0
        %715 = vmatmul.mubr.bf16.gmra.mxu0 %v672
        %v716 = vpop.f32.mrf.mxu0
        %v717 = vadd.f32 0.0, %v716
        %v718 = vpop.f32.mrf.mxu0
        %v719 = vpop.f32.mrf.mxu0
        %v720 = vadd.f32 0.0, %v719
        %v721 = vpop.f32.mrf.mxu0
        %722 = vdwg.mxu0
        %v723 = vadd.f32 %v645, %v709
        %v724 = vadd.f32 %v646, %v712
        %v725 = vadd.f32 %v647, %v717
        %v726 = vadd.f32 %v648, %v720
        %v727 = vmax.f32 %v723, 0.0
        %v728 = vmax.f32 %v724, 0.0
        %v729 = vmax.f32 %v725, 0.0
        %v730 = vmax.f32 %v726, 0.0
        %v731 = vpack.c.bf16 %v728, %v727
        %v732 = vpack.c.bf16 %v730, %v729
        %v733 = vld [vmem:[%s7] sm:$0x1]
        %v734 = vld [vmem:[%s6] sm:$0xf]
        %v735 = vld [vmem:[%s6 + $0x4] sm:$0xf]
        %v736 = vld [vmem:[%s6 + $0x8] sm:$0xf]
        %v737 = vld [vmem:[%s6 + $0xc] sm:$0xf]
        %v742 = vunpack.c.l.b16 %v734
        %v743 = vunpack.c.l.b16 %v735
        %v744 = vunpack.c.l.b16 %v736
        %v745 = vunpack.c.l.b16 %v737
        %v746 = vpack.c.b16 %v743, %v742
        %v747 = vpack.c.b16 %v745, %v744
        %vm750 = vcmask 261120
        %v752 = vsel %vm750, %v731, 0
        %v755 = vsel %vm750, %v732, 0
        %757 = vmatprep.subr.bf16.mxu0 0
        %758 = vmatpush1.bf16.msra.mxu0 0
        %759 = vmatprep.subr.bf16.mxu0 0
        %760 = vmatpush1.bf16.msra.mxu0 0
        %761 = vmatprep.subr.bf16.mxu0 0
        %762 = vmatpush1.bf16.msra.mxu0 0
        %763 = vmatprep.subr.bf16.mxu0 0
        %764 = vmatpush1.bf16.msra.mxu0 0
        %765 = vmatprep.subr.bf16.mxu0 0
        %766 = vmatpush1.bf16.msra.mxu0 0
        %767 = vmatprep.subr.bf16.mxu0 0
        %768 = vmatpush1.bf16.msra.mxu0 0
        %769 = vmatprep.subr.bf16.mxu0 0
        %770 = vmatpush1.bf16.msra.mxu0 %v747
        %771 = vmatprep.subr.bf16.mxu0 0
        %772 = vmatpush1.bf16.msra.mxu0 %v746
        %773 = vmatprep.subr.bf16.mxu0 0
        %774 = vmatpush2.bf16.msra.mxu0 0
        %775 = vmatprep.subr.bf16.mxu0 0
        %776 = vmatpush2.bf16.msra.mxu0 0
        %777 = vmatprep.subr.bf16.mxu0 0
        %778 = vmatpush2.bf16.msra.mxu0 0
        %779 = vmatprep.subr.bf16.mxu0 0
        %780 = vmatpush2.bf16.msra.mxu0 0
        %781 = vmatprep.subr.bf16.mxu0 0
        %782 = vmatpush2.bf16.msra.mxu0 0
        %783 = vmatprep.subr.bf16.mxu0 0
        %784 = vmatpush2.bf16.msra.mxu0 0
        %785 = vmatprep.subr.bf16.mxu0 0
        %786 = vmatpush2.bf16.msra.mxu0 0
        %787 = vmatprep.subr.bf16.mxu0 0
        %788 = vmatpush2.bf16.msra.mxu0 0
        %789 = vmatprep.mubr.bf16.mxu0 0
        %790 = vmatmul.mubr.bf16.gmra.mxu0 %v752
        %v791 = vpop.f32.mrf.mxu0
        %v792 = vadd.f32 0.0, %v791
        %v793 = vpop.f32.mrf.mxu0
        %v794 = vpop.f32.mrf.mxu0
        %v795 = vadd.f32 0.0, %v794
        %v796 = vpop.f32.mrf.mxu0
        %797 = vmatprep.mubr.bf16.mxu0 0
        %798 = vmatmul.mubr.bf16.gmra.mxu0 %v755
        %v799 = vpop.f32.mrf.mxu0
        %v800 = vadd.f32 0.0, %v799
        %v801 = vpop.f32.mrf.mxu0
        %v802 = vpop.f32.mrf.mxu0
        %v803 = vadd.f32 0.0, %v802
        %v804 = vpop.f32.mrf.mxu0
        %805 = vdwg.mxu0
        %v807 = vlaneseq
        %v808 = vshrl.u32 %v807, 7
        %v809 = vsub.s32 0, %v808
        %v810 = vrot.slane %v733, %v809
        %v812 = vadd.f32 %v810, %v792
        %v813 = vadd.f32 %v810, %v795
        %v814 = vadd.f32 %v810, %v800
        %v815 = vadd.f32 %v810, %v803
        %v816 = vmul.f32 %v812, 0.5
        %v817 = vmul.f32 %v813, 0.5
        %v818 = vmul.f32 %v814, 0.5
        %v819 = vmul.f32 %v815, 0.5
        %v820 = vmul.f32 %v816, 1.442695
        %v821 = vpow.pop %v820
        %v822 = vmul.f32 %v817, 1.442695
        %v823 = vpow.pop %v822
        %v824 = vmul.f32 %v818, 1.442695
        %v825 = vpow.pop %v824
        %v826 = vmul.f32 %v819, 1.442695
        %v827 = vpow.pop %v826
        %832 = vrot.lane.b32.xlu0 %v821, 112
        %v833 = vpop.permute.xlu0 %832
        %834 = vrot.lane.b32.xlu0 %v823, 112
        %v835 = vpop.permute.xlu0 %834
        %836 = vrot.lane.b32.xlu0 %v825, 112
        %v837 = vpop.permute.xlu0 %836
        %838 = vrot.lane.b32.xlu0 %v827, 112
        %v839 = vpop.permute.xlu0 %838
        %v844 = vmul.f32 %v536, %v833
        %v845 = vmul.f32 %v537, %v835
        %v846 = vmul.f32 %v538, %v837
        %v847 = vmul.f32 %v539, %v839
        %v848 = vadd.f32 %v812, %v844
        %v849 = vadd.f32 %v813, %v845
        %v850 = vadd.f32 %v814, %v846
        %v851 = vadd.f32 %v815, %v847
        %v852 = vpack.c.bf16 %v849, %v848
        %v853 = vpack.c.bf16 %v851, %v850
        %v854 = vld [vmem:[%s10] sm:$0x1]
        %v855 = vld [vmem:[%s8] sm:$0xf]
        %v856 = vld [vmem:[%s8 + $0x4] sm:$0xf]
        %v859 = vunpack.c.l.b16 %v855
        %v860 = vunpack.c.l.b16 %v856
        %v861 = vpack.c.b16 %v860, %v859
        %v864 = vsel %vm667, %v852, 0
        %v867 = vsel %vm667, %v853, 0
        %869 = vmatprep.subr.bf16.mxu0 0
        %870 = vmatpush1.bf16.msra.mxu0 0
        %871 = vmatprep.subr.bf16.mxu0 0
        %872 = vmatpush1.bf16.msra.mxu0 0
        %873 = vmatprep.subr.bf16.mxu0 0
        %874 = vmatpush1.bf16.msra.mxu0 0
        %875 = vmatprep.subr.bf16.mxu0 0
        %876 = vmatpush1.bf16.msra.mxu0 0
        %877 = vmatprep.subr.bf16.mxu0 0
        %878 = vmatpush1.bf16.msra.mxu0 0
        %879 = vmatprep.subr.bf16.mxu0 0
        %880 = vmatpush1.bf16.msra.mxu0 0
        %881 = vmatprep.subr.bf16.mxu0 0
        %882 = vmatpush1.bf16.msra.mxu0 0
        %883 = vmatprep.subr.bf16.mxu0 0
        %884 = vmatpush1.bf16.msra.mxu0 %v861
        %885 = vmatprep.subr.bf16.mxu0 0
        %886 = vmatpush2.bf16.msra.mxu0 0
        %887 = vmatprep.subr.bf16.mxu0 0
        %888 = vmatpush2.bf16.msra.mxu0 0
        %889 = vmatprep.subr.bf16.mxu0 0
        %890 = vmatpush2.bf16.msra.mxu0 0
        %891 = vmatprep.subr.bf16.mxu0 0
        %892 = vmatpush2.bf16.msra.mxu0 0
        %893 = vmatprep.subr.bf16.mxu0 0
        %894 = vmatpush2.bf16.msra.mxu0 0
        %895 = vmatprep.subr.bf16.mxu0 0
        %896 = vmatpush2.bf16.msra.mxu0 0
        %897 = vmatprep.subr.bf16.mxu0 0
        %898 = vmatpush2.bf16.msra.mxu0 0
        %899 = vmatprep.subr.bf16.mxu0 0
        %900 = vmatpush2.bf16.msra.mxu0 0
        %901 = vmatprep.mubr.bf16.mxu0 0
        %902 = vmatmul.mubr.bf16.gmra.mxu0 %v864
        %v903 = vpop.f32.mrf.mxu0
        %v904 = vadd.f32 0.0, %v903
        %v905 = vpop.f32.mrf.mxu0
        %v906 = vpop.f32.mrf.mxu0
        %v907 = vadd.f32 0.0, %v906
        %v908 = vpop.f32.mrf.mxu0
        %909 = vmatprep.mubr.bf16.mxu0 0
        %910 = vmatmul.mubr.bf16.gmra.mxu0 %v867
        %v911 = vpop.f32.mrf.mxu0
        %v912 = vadd.f32 0.0, %v911
        %v913 = vpop.f32.mrf.mxu0
        %v914 = vpop.f32.mrf.mxu0
        %v915 = vadd.f32 0.0, %v914
        %v916 = vpop.f32.mrf.mxu0
        %917 = vdwg.mxu0
        %v919 = vlaneseq
        %v920 = vshrl.u32 %v919, 7
        %v921 = vsub.s32 0, %v920
        %v922 = vrot.slane %v854, %v921
        %v924 = vadd.f32 %v922, %v904
        %v925 = vadd.f32 %v922, %v907
        %v926 = vadd.f32 %v922, %v912
        %v927 = vadd.f32 %v922, %v915
        %v928 = vld [vmem:[%s9] sm:$0xf]
        %v929 = vld [vmem:[%s9 + $0x4] sm:$0xf]
        %v932 = vunpack.c.l.b16 %v928
        %v933 = vunpack.c.l.b16 %v929
        %v934 = vpack.c.b16 %v933, %v932
        %936 = vmatprep.subr.bf16.mxu0 0
        %937 = vmatpush1.bf16.msra.mxu0 0
        %938 = vmatprep.subr.bf16.mxu0 0
        %939 = vmatpush1.bf16.msra.mxu0 0
        %940 = vmatprep.subr.bf16.mxu0 0
        %941 = vmatpush1.bf16.msra.mxu0 0
        %942 = vmatprep.subr.bf16.mxu0 0
        %943 = vmatpush1.bf16.msra.mxu0 0
        %944 = vmatprep.subr.bf16.mxu0 0
        %945 = vmatpush1.bf16.msra.mxu0 0
        %946 = vmatprep.subr.bf16.mxu0 0
        %947 = vmatpush1.bf16.msra.mxu0 0
        %948 = vmatprep.subr.bf16.mxu0 0
        %949 = vmatpush1.bf16.msra.mxu0 0
        %950 = vmatprep.subr.bf16.mxu0 0
        %951 = vmatpush1.bf16.msra.mxu0 %v934
        %952 = vmatprep.subr.bf16.mxu0 0
        %953 = vmatpush2.bf16.msra.mxu0 0
        %954 = vmatprep.subr.bf16.mxu0 0
        %955 = vmatpush2.bf16.msra.mxu0 0
        %956 = vmatprep.subr.bf16.mxu0 0
        %957 = vmatpush2.bf16.msra.mxu0 0
        %958 = vmatprep.subr.bf16.mxu0 0
        %959 = vmatpush2.bf16.msra.mxu0 0
        %960 = vmatprep.subr.bf16.mxu0 0
        %961 = vmatpush2.bf16.msra.mxu0 0
        %962 = vmatprep.subr.bf16.mxu0 0
        %963 = vmatpush2.bf16.msra.mxu0 0
        %964 = vmatprep.subr.bf16.mxu0 0
        %965 = vmatpush2.bf16.msra.mxu0 0
        %966 = vmatprep.subr.bf16.mxu0 0
        %967 = vmatpush2.bf16.msra.mxu0 0
        %968 = vmatprep.mubr.bf16.mxu0 0
        %969 = vmatmul.mubr.bf16.gmra.mxu0 %v669
        %v970 = vpop.f32.mrf.mxu0
        %v971 = vadd.f32 0.0, %v970
        %v972 = vpop.f32.mrf.mxu0
        %v973 = vpop.f32.mrf.mxu0
        %v974 = vadd.f32 0.0, %v973
        %v975 = vpop.f32.mrf.mxu0
        %976 = vmatprep.mubr.bf16.mxu0 0
        %977 = vmatmul.mubr.bf16.gmra.mxu0 %v672
        %v978 = vpop.f32.mrf.mxu0
        %v979 = vadd.f32 0.0, %v978
        %v980 = vpop.f32.mrf.mxu0
        %v981 = vpop.f32.mrf.mxu0
        %v982 = vadd.f32 0.0, %v981
        %v983 = vpop.f32.mrf.mxu0
        %984 = vdwg.mxu0
        %v985 = vadd.f32 %v924, %v971
        %v986 = vadd.f32 %v925, %v974
        %v987 = vadd.f32 %v926, %v979
        %v988 = vadd.f32 %v927, %v982
        %v989 = vmax.f32 %v985, 0.0
        %v990 = vmax.f32 %v986, 0.0
        %v991 = vmax.f32 %v987, 0.0
        %v992 = vmax.f32 %v988, 0.0
        %v993 = vpack.c.bf16 %v990, %v989
        %v994 = vpack.c.bf16 %v992, %v991
        %v995 = vld [vmem:[%s12] sm:$0x1]
        %v996 = vld [vmem:[%s11] sm:$0xf]
        %v997 = vld [vmem:[%s11 + $0x4] sm:$0xf]
        %v998 = vld [vmem:[%s11 + $0x8] sm:$0xf]
        %v999 = vld [vmem:[%s11 + $0xc] sm:$0xf]
        %v1004 = vunpack.c.l.b16 %v996
        %v1005 = vunpack.c.l.b16 %v997
        %v1006 = vunpack.c.l.b16 %v998
        %v1007 = vunpack.c.l.b16 %v999
        %v1008 = vpack.c.b16 %v1005, %v1004
        %v1009 = vpack.c.b16 %v1007, %v1006
        %v1013 = vsel %vm750, %v993, 0
        %v1016 = vsel %vm750, %v994, 0
        %1018 = vmatprep.subr.bf16.mxu0 0
        %1019 = vmatpush1.bf16.msra.mxu0 0
        %1020 = vmatprep.subr.bf16.mxu0 0
        %1021 = vmatpush1.bf16.msra.mxu0 0
        %1022 = vmatprep.subr.bf16.mxu0 0
        %1023 = vmatpush1.bf16.msra.mxu0 0
        %1024 = vmatprep.subr.bf16.mxu0 0
        %1025 = vmatpush1.bf16.msra.mxu0 0
        %1026 = vmatprep.subr.bf16.mxu0 0
        %1027 = vmatpush1.bf16.msra.mxu0 0
        %1028 = vmatprep.subr.bf16.mxu0 0
        %1029 = vmatpush1.bf16.msra.mxu0 0
        %1030 = vmatprep.subr.bf16.mxu0 0
        %1031 = vmatpush1.bf16.msra.mxu0 %v1009
        %1032 = vmatprep.subr.bf16.mxu0 0
        %1033 = vmatpush1.bf16.msra.mxu0 %v1008
        %1034 = vmatprep.subr.bf16.mxu0 0
        %1035 = vmatpush2.bf16.msra.mxu0 0
        %1036 = vmatprep.subr.bf16.mxu0 0
        %1037 = vmatpush2.bf16.msra.mxu0 0
        %1038 = vmatprep.subr.bf16.mxu0 0
        %1039 = vmatpush2.bf16.msra.mxu0 0
        %1040 = vmatprep.subr.bf16.mxu0 0
        %1041 = vmatpush2.bf16.msra.mxu0 0
        %1042 = vmatprep.subr.bf16.mxu0 0
        %1043 = vmatpush2.bf16.msra.mxu0 0
        %1044 = vmatprep.subr.bf16.mxu0 0
        %1045 = vmatpush2.bf16.msra.mxu0 0
        %1046 = vmatprep.subr.bf16.mxu0 0
        %1047 = vmatpush2.bf16.msra.mxu0 0
        %1048 = vmatprep.subr.bf16.mxu0 0
        %1049 = vmatpush2.bf16.msra.mxu0 0
        %1050 = vmatprep.mubr.bf16.mxu0 0
        %1051 = vmatmul.mubr.bf16.gmra.mxu0 %v1013
        %v1052 = vpop.f32.mrf.mxu0
        %v1053 = vadd.f32 0.0, %v1052
        %v1054 = vpop.f32.mrf.mxu0
        %v1055 = vpop.f32.mrf.mxu0
        %v1056 = vadd.f32 0.0, %v1055
        %v1057 = vpop.f32.mrf.mxu0
        %1058 = vmatprep.mubr.bf16.mxu0 0
        %1059 = vmatmul.mubr.bf16.gmra.mxu0 %v1016
        %v1060 = vpop.f32.mrf.mxu0
        %v1061 = vadd.f32 0.0, %v1060
        %v1062 = vpop.f32.mrf.mxu0
        %v1063 = vpop.f32.mrf.mxu0
        %v1064 = vadd.f32 0.0, %v1063
        %v1065 = vpop.f32.mrf.mxu0
        %1066 = vdwg.mxu0
        %v1068 = vlaneseq
        %v1069 = vshrl.u32 %v1068, 7
        %v1070 = vsub.s32 0, %v1069
        %v1071 = vrot.slane %v995, %v1070
        %v1073 = vadd.f32 %v1071, %v1053
        %v1074 = vadd.f32 %v1071, %v1056
        %v1075 = vadd.f32 %v1071, %v1061
        %v1076 = vadd.f32 %v1071, %v1064
        %1077 = vst.msk [vmem:[%s494] sm:$0xff] %vm583, %v1073
        %1078 = vst.msk [vmem:[%s494 + $0x8] sm:$0xff] %vm583, %v1074
        %1079 = vst.msk [vmem:[%s494 + $0x10] sm:$0xff] %vm583, %v1075
        %1080 = vst.msk [vmem:[%s494 + $0x18] sm:$0xff] %vm583, %v1076
        %1081 = vst.msk [vmem:[%s525] sm:$0xff] %vm750, %v812
        %1082 = vst.msk [vmem:[%s525 + $0x8] sm:$0xff] %vm750, %v813
        %1083 = vst.msk [vmem:[%s525 + $0x10] sm:$0xff] %vm750, %v814
        %1084 = vst.msk [vmem:[%s525 + $0x18] sm:$0xff] %vm750, %v815
        %s1085 = sand.u32 %s325, 1
        %s1086 = scalar_lea.sflag [#allocation3], %s1085
        %s1087 = sand.u32 %s325, 1
        %s1088 = smul.addr %s1087, 32
        %s1089 = scalar_lea.vmem [#allocation2], %s1088
        %s1090 = smul.u32 4, %s29
        %p1091 = scmp.lt.s32.totalorder %s1090, 7
        %s1092 = scalar_select %p1091, %s1090, 7
        %s1093 = smul.addr %s1092, 8
        %s1094 = scalar_lea.vmem %s14, %s1093
        // Predicated region
        $region73: #{tpu_custom_call.1} parent=71 // pred_check
          %p1095 = pneg %p335
        $region74: #{tpu_custom_call.1} parent=71 // pred_check_branch
          %1097 = sbr.rel (%p1095) target = $region76
        $region75: #{tpu_custom_call.1} parent=71 // pred_region
          %s1098 = smul.u32 4, %s29
          %s1100 = ssub.s32 512, 512
          %1101 = vsyncadd %s1086, %s1100
          %s1102 = smul.addr %s1098, 128
          %s1103 = scalar_lea.hbm %s13, %s1102
          %s1104 = sshll.u32 %s1089, 4
          %s1105 = int_to_ptr.vmem [resolvable:$true] %s1104
          %1110 = dma.vmem_to_hbm [thread:$0]  %s1105, 512, %s1103, %s1086, 128, 128, 8
        $region76: #{tpu_custom_call.1} parent=71 // pred_fallthru
          _
        // Predicated region
        $region77: #{tpu_custom_call.1} parent=71 // pred_check
          %p1111 = pneg %p361
        $region78: #{tpu_custom_call.1} parent=71 // pred_check_branch
          %1113 = sbr.rel (%p1111) target = $region80
        $region79: #{tpu_custom_call.1} parent=71 // pred_region
          %s1114 = smul.u32 4, %s29
        $region80: #{tpu_custom_call.1} parent=71 // pred_fallthru
          _
      $region72: #{tpu_custom_call.1} parent=5 // pred_fallthru
        _
      %p1115 = scmp.le.s32.totalorder 2, %s24
      // Predicated region
      $region81: #{tpu_custom_call.1} parent=5 // pred_check
        %p1116 = pneg %p1115
      $region82: #{tpu_custom_call.1} parent=5 // pred_check_branch
        %1118 = sbr.rel (%p1116) target = $region84
      $region83: #{tpu_custom_call.1} parent=5 // pred_region
        %s1119 = ssub.s32 %s24, 2
        // Predicated region
        $region85: #{tpu_custom_call.1} parent=83 // pred_check
          %p1120 = pneg %p341
        $region86: #{tpu_custom_call.1} parent=83 // pred_check_branch
          %1122 = sbr.rel (%p1120) target = $region88
        $region87: #{tpu_custom_call.1} parent=83 // pred_region
          %s1123 = sand.u32 %s326, 1
          %s1124 = scalar_lea.sflag [#allocation3], %s1123
          %s1125 = sand.u32 %s326, 1
          %s1126 = smul.addr %s1125, 32
          %s1127 = scalar_lea.vmem [#allocation2], %s1126
          %1128 = dma.done %s1124, 512
        $region88: #{tpu_custom_call.1} parent=83 // pred_fallthru
          _
        // Predicated region
        $region89: #{tpu_custom_call.1} parent=83 // pred_check
          %p1129 = pneg %p367
        $region90: #{tpu_custom_call.1} parent=83 // pred_check_branch
          %1131 = sbr.rel (%p1129) target = $region92
        $region91: #{tpu_custom_call.1} parent=83 // pred_region
          %s1132 = smul.u32 4, %s30
          %p1133 = scmp.lt.s32.totalorder %s1132, 7
          %s1134 = scalar_select %p1133, %s1132, 7
          %s1135 = smul.addr %s1134, 8
          %s1136 = scalar_lea.vmem %s14, %s1135
        $region92: #{tpu_custom_call.1} parent=83 // pred_fallthru
          _
      $region84: #{tpu_custom_call.1} parent=5 // pred_fallthru
        _
    $region6: #{tpu_custom_call.1} parent=1 // loop_footer
      %s28 = sadd.s32 1, %s24
    $region7: #{tpu_custom_call.1} parent=1 // loop_footer_branch
      %23 = sbr.rel target = $region3
    $region8: #{tpu_custom_call.1} parent=1 // loop_exit
      _
    %1137 = vsyncpa [#allocation3], 1
    %s1138 = scalar_lea.sflag [#allocation3], 1
    %1139 = vsyncpa %s1138, 1

</llo_original>
